<compile_context>
chip_gen: v6e
topology: v6e:2x2x1
jax: 0.10.0
libtpu: 0.0.40
codegen_flags: <defaults>
</compile_context>

<pallas_src>
import functools
import math

import jax
import jax.numpy as jnp
from jax.experimental import pallas as pl
from jax.experimental.pallas import tpu as pltpu


def _round_up(x: int, m: int) -> int:
    return ((x + m - 1) // m) * m


def _phm_linear_kernel(x_ref, rule_ref, w_ref, b_ref, o_ref, *,
                       d, compute_dtype, pre_tiled):
    """x_ref:   (tb, in_features)                     VMEM batch tile
       rule_ref:(d, d, d*op_pad)                      rule[i,a,c] repeated op_pad times on lanes
       w_ref:   (d, ip, d*op_pad) if pre_tiled else (d, ip, op_pad)
       b_ref:   (1, d*op_pad)
       o_ref:   (tb, d*op_pad)                        lane-dense output tile."""
    W = w_ref[...]
    re = rule_ref[...]

    # Each Wt[i] is W[i] tiled across the d column bands -> lane-dense (ip, d*op_pad).
    if pre_tiled:
        Wt = [W[i] for i in range(d)]
    else:
        Wt = [jnp.concatenate([W[i]] * d, axis=1) for i in range(d)]

    # Row band a of H:  H[a*ip+k, c*op_pad+p] = sum_i rule[i,a,c] * W[i,k,p]
    # built as d*d full-width vector FMAs; H lives in registers only.
    bands = []
    for a in range(d):
        band = re[0, a:a + 1, :] * Wt[0]
        for i in range(1, d):
            band = band + re[i, a:a + 1, :] * Wt[i]
        bands.append(band)
    H = jnp.concatenate(bands, axis=0)        # (d*ip, d*op_pad)

    x = x_ref[...]
    if compute_dtype is not None:
        x = x.astype(compute_dtype)
        H = H.astype(compute_dtype)

    y = jnp.dot(x, H, preferred_element_type=jnp.float32)
    o_ref[...] = (y + b_ref[...]).astype(o_ref.dtype)


def phm_linear(x, phm_rule, W, bias, *, compute_dtype=None, batch_tile=None):
    """x: (B, in_features); phm_rule: (d, d, d); W: (d, in_per, out_per);
    bias: (out_features,).  compute_dtype: optional MXU operand dtype (e.g. bf16)."""
    B, in_features = x.shape
    d, ip, op = W.shape
    out_features = d * op
    assert in_features == d * ip
    assert phm_rule.shape == (d, d, d)
    assert bias.shape == (out_features,)

    # ---- wrapper-side layout plumbing (parameters only) -------------------------
    # Pad the per-axis output dim so d*op_pad is a multiple of 128 (lane-dense
    # output stores / MXU-shaped N).  Padded columns of H are zero -> sliced away.
    if out_features % 128 == 0:
        op_pad = op
    else:
        step = 128 // math.gcd(d, 128)
        op_pad = _round_up(op, step)
    out_pad = d * op_pad

    W_p = W if op_pad == op else jnp.pad(W, ((0, 0), (0, 0), (0, op_pad - op)))
    b_p = bias.reshape(d, op)
    if op_pad != op:
        b_p = jnp.pad(b_p, ((0, 0), (0, op_pad - op)))
    b_p = b_p.reshape(1, out_pad)
    # rule_exp[i, a, c*op_pad + p] = phm_rule[i, a, c]   (tiny: d*d*out_pad elems)
    rule_exp = jnp.repeat(phm_rule, op_pad, axis=2)

    # Pre-tile W across the d column bands when the tiled copy stays small
    # (adapter-sized layers); removes d lane concats from every grid step.
    tiled_bytes = d * ip * out_pad * 4
    pre_tiled = tiled_bytes <= (8 << 20)
    if pre_tiled:
        W_in = jnp.tile(W_p, (1, 1, d))            # (d, ip, d*op_pad)
        w_block = (d, ip, out_pad)
    else:
        W_in = W_p                                  # (d, ip, op_pad)
        w_block = (d, ip, op_pad)

    # ---- grid over batch --------------------------------------------------------
    if batch_tile is None:
        batch_tile = min(256, _round_up(B, 8))
    tb = batch_tile
    grid = (pl.cdiv(B, tb),)

    kernel = functools.partial(_phm_linear_kernel, d=d,
                               compute_dtype=compute_dtype, pre_tiled=pre_tiled)

    y_pad = pl.pallas_call(
        kernel,
        out_shape=jax.ShapeDtypeStruct((B, out_pad), x.dtype),
        grid=grid,
        in_specs=[
            pl.BlockSpec((tb, in_features), lambda i: (i, 0)),     # x: tiled over batch
            pl.BlockSpec((d, d, out_pad), lambda i: (0, 0, 0)),    # rule_exp: loaded once
            pl.BlockSpec(w_block, lambda i: (0, 0, 0)),            # W (maybe pre-tiled): once
            pl.BlockSpec((1, out_pad), lambda i: (0, 0)),          # bias: loaded once
        ],
        out_specs=pl.BlockSpec((tb, out_pad), lambda i: (i, 0)),
        compiler_params=pltpu.CompilerParams(
            dimension_semantics=("parallel",),
            vmem_limit_bytes=32 * 1024 * 1024,
        ),
    )(x, rule_exp, W_in, b_p)

    if op_pad == op:
        return y_pad
    return y_pad.reshape(B, d, op_pad)[:, :, :op].reshape(B, out_features)


def reference_phm_linear(x, phm_rule, W, bias):
    # H[a*ip+k, c*op+p] = sum_i phm_rule[i,a,c] * W[i,k,p]  (sum of kron products)
    d, in_p, out_p = W.shape
    H = jnp.einsum('iac,ikp->akcp', phm_rule, W).reshape(d * in_p, d * out_p)
    return x @ H + bias[None, :]


if __name__ == "__main__":
    # Module hyperparameters (small, consistent with PHMLinear constraints):
    phm_dim = 4
    in_features = 32
    out_features = 32
    batch = 8
    in_p = in_features // phm_dim
    out_p = out_features // phm_dim

    key = jax.random.PRNGKey(0)
    k_x, k_w, k_c = jax.random.split(key, 3)

    # Deterministic parameter init mirroring reset_parameters():
    #  W: glorot-uniform with gain sqrt(2) per phm slice (in_p, out_p)
    gain = math.sqrt(2.0)
    limit = gain * math.sqrt(6.0 / (in_p + out_p))
    W = jax.random.uniform(k_w, (phm_dim, in_p, out_p), jnp.float32, -limit, limit)
    #  phm_rule: normal(0, 0.01)
    phm_rule = 0.01 * jax.random.normal(k_c, (phm_dim, phm_dim, phm_dim), jnp.float32)
    #  bias: zeros
    bias = jnp.zeros((out_features,), jnp.float32)

    # Input
    x = jax.random.normal(k_x, (batch, in_features), jnp.float32)

    y_ref = reference_phm_linear(x, phm_rule, W, bias)

    # f32 path (matches the PyTorch module numerics)
    y = jax.block_until_ready(phm_linear(x, phm_rule, W, bias))
    assert y.shape == (batch, out_features)
    assert jnp.allclose(y, y_ref, atol=1e-5, rtol=1e-5), \
        f"f32 max abs err = {jnp.max(jnp.abs(y - y_ref))}"

    # bf16-operand / f32-accumulate path (v6e/v7x MXU optimization)
    y_bf = jax.block_until_ready(
        phm_linear(x, phm_rule, W, bias, compute_dtype=jnp.bfloat16))
    assert y_bf.shape == (batch, out_features)
    assert jnp.allclose(y_bf, y_ref, atol=5e-3, rtol=5e-2), \
        f"bf16 max abs err = {jnp.max(jnp.abs(y_bf - y_ref))}"

    print("KERNEL_OK")
</pallas_src>

<mosaic_0001>
module attributes {stable_mosaic.version = 11 : i64} {
  func.func @_phm_linear_kernel(%arg0: i32, %arg1: memref<8x32xf32, #tpu.memory_space<vmem>>, %arg2: memref<4x4x128xf32, #tpu.memory_space<vmem>>, %arg3: memref<4x8x128xf32, #tpu.memory_space<vmem>>, %arg4: memref<1x128xf32, #tpu.memory_space<vmem>>, %arg5: memref<8x128xf32, #tpu.memory_space<vmem>>) attributes {dimension_semantics = [#tpu.dimension_semantics<parallel>], iteration_bounds = array<i64: 1>, scalar_prefetch = 0 : i64, scratch_operands = 0 : i64, tpu.core_type = #tpu.core_type<tc>, window_params = [{transform_indices = @transform_0, window_bounds = array<i64: 8, 32>}, {pipeline_mode = #tpu.pipeline_mode<synchronous>, transform_indices = @transform_1, window_bounds = array<i64: 4, 4, 128>}, {pipeline_mode = #tpu.pipeline_mode<synchronous>, transform_indices = @transform_2, window_bounds = array<i64: 4, 8, 128>}, {pipeline_mode = #tpu.pipeline_mode<synchronous>, transform_indices = @transform_3, window_bounds = array<i64: 1, 128>}, {transform_indices = @transform_4, window_bounds = array<i64: 8, 128>}]} {
    %c0 = arith.constant 0 : index
    %c0_0 = arith.constant 0 : index
    %c0_1 = arith.constant 0 : index
    %0 = vector.load %arg3[%c0, %c0_0, %c0_1] : memref<4x8x128xf32, #tpu.memory_space<vmem>>, vector<4x8x128xf32>
    %c0_2 = arith.constant 0 : index
    %c0_3 = arith.constant 0 : index
    %c0_4 = arith.constant 0 : index
    %1 = vector.load %arg2[%c0_2, %c0_3, %c0_4] : memref<4x4x128xf32, #tpu.memory_space<vmem>>, vector<4x4x128xf32>
    %2 = vector.extract_strided_slice %0 {offsets = [0, 0, 0], sizes = [1, 8, 128], strides = [1, 1, 1]} : vector<4x8x128xf32> to vector<1x8x128xf32>
    %3 = vector.shape_cast %2 : vector<1x8x128xf32> to vector<8x128xf32>
    %4 = vector.extract_strided_slice %0 {offsets = [1, 0, 0], sizes = [1, 8, 128], strides = [1, 1, 1]} : vector<4x8x128xf32> to vector<1x8x128xf32>
    %5 = vector.shape_cast %4 : vector<1x8x128xf32> to vector<8x128xf32>
    %6 = vector.extract_strided_slice %0 {offsets = [2, 0, 0], sizes = [1, 8, 128], strides = [1, 1, 1]} : vector<4x8x128xf32> to vector<1x8x128xf32>
    %7 = vector.shape_cast %6 : vector<1x8x128xf32> to vector<8x128xf32>
    %8 = vector.extract_strided_slice %0 {offsets = [3, 0, 0], sizes = [1, 8, 128], strides = [1, 1, 1]} : vector<4x8x128xf32> to vector<1x8x128xf32>
    %9 = vector.shape_cast %8 : vector<1x8x128xf32> to vector<8x128xf32>
    %10 = vector.extract_strided_slice %1 {offsets = [0, 0, 0], sizes = [1, 1, 128], strides = [1, 1, 1]} : vector<4x4x128xf32> to vector<1x1x128xf32>
    %11 = vector.shape_cast %10 : vector<1x1x128xf32> to vector<1x128xf32>
    %12 = vector.broadcast %11 : vector<1x128xf32> to vector<8x128xf32>
    %13 = arith.mulf %12, %3 : vector<8x128xf32>
    %14 = vector.extract_strided_slice %1 {offsets = [1, 0, 0], sizes = [1, 1, 128], strides = [1, 1, 1]} : vector<4x4x128xf32> to vector<1x1x128xf32>
    %15 = vector.shape_cast %14 : vector<1x1x128xf32> to vector<1x128xf32>
    %16 = vector.broadcast %15 : vector<1x128xf32> to vector<8x128xf32>
    %17 = arith.mulf %16, %5 : vector<8x128xf32>
    %18 = arith.addf %13, %17 : vector<8x128xf32>
    %19 = vector.extract_strided_slice %1 {offsets = [2, 0, 0], sizes = [1, 1, 128], strides = [1, 1, 1]} : vector<4x4x128xf32> to vector<1x1x128xf32>
    %20 = vector.shape_cast %19 : vector<1x1x128xf32> to vector<1x128xf32>
    %21 = vector.broadcast %20 : vector<1x128xf32> to vector<8x128xf32>
    %22 = arith.mulf %21, %7 : vector<8x128xf32>
    %23 = arith.addf %18, %22 : vector<8x128xf32>
    %24 = vector.extract_strided_slice %1 {offsets = [3, 0, 0], sizes = [1, 1, 128], strides = [1, 1, 1]} : vector<4x4x128xf32> to vector<1x1x128xf32>
    %25 = vector.shape_cast %24 : vector<1x1x128xf32> to vector<1x128xf32>
    %26 = vector.broadcast %25 : vector<1x128xf32> to vector<8x128xf32>
    %27 = arith.mulf %26, %9 : vector<8x128xf32>
    %28 = arith.addf %23, %27 : vector<8x128xf32>
    %29 = vector.extract_strided_slice %1 {offsets = [0, 1, 0], sizes = [1, 1, 128], strides = [1, 1, 1]} : vector<4x4x128xf32> to vector<1x1x128xf32>
    %30 = vector.shape_cast %29 : vector<1x1x128xf32> to vector<1x128xf32>
    %31 = vector.broadcast %30 : vector<1x128xf32> to vector<8x128xf32>
    %32 = arith.mulf %31, %3 : vector<8x128xf32>
    %33 = vector.extract_strided_slice %1 {offsets = [1, 1, 0], sizes = [1, 1, 128], strides = [1, 1, 1]} : vector<4x4x128xf32> to vector<1x1x128xf32>
    %34 = vector.shape_cast %33 : vector<1x1x128xf32> to vector<1x128xf32>
    %35 = vector.broadcast %34 : vector<1x128xf32> to vector<8x128xf32>
    %36 = arith.mulf %35, %5 : vector<8x128xf32>
    %37 = arith.addf %32, %36 : vector<8x128xf32>
    %38 = vector.extract_strided_slice %1 {offsets = [2, 1, 0], sizes = [1, 1, 128], strides = [1, 1, 1]} : vector<4x4x128xf32> to vector<1x1x128xf32>
    %39 = vector.shape_cast %38 : vector<1x1x128xf32> to vector<1x128xf32>
    %40 = vector.broadcast %39 : vector<1x128xf32> to vector<8x128xf32>
    %41 = arith.mulf %40, %7 : vector<8x128xf32>
    %42 = arith.addf %37, %41 : vector<8x128xf32>
    %43 = vector.extract_strided_slice %1 {offsets = [3, 1, 0], sizes = [1, 1, 128], strides = [1, 1, 1]} : vector<4x4x128xf32> to vector<1x1x128xf32>
    %44 = vector.shape_cast %43 : vector<1x1x128xf32> to vector<1x128xf32>
    %45 = vector.broadcast %44 : vector<1x128xf32> to vector<8x128xf32>
    %46 = arith.mulf %45, %9 : vector<8x128xf32>
    %47 = arith.addf %42, %46 : vector<8x128xf32>
    %48 = vector.extract_strided_slice %1 {offsets = [0, 2, 0], sizes = [1, 1, 128], strides = [1, 1, 1]} : vector<4x4x128xf32> to vector<1x1x128xf32>
    %49 = vector.shape_cast %48 : vector<1x1x128xf32> to vector<1x128xf32>
    %50 = vector.broadcast %49 : vector<1x128xf32> to vector<8x128xf32>
    %51 = arith.mulf %50, %3 : vector<8x128xf32>
    %52 = vector.extract_strided_slice %1 {offsets = [1, 2, 0], sizes = [1, 1, 128], strides = [1, 1, 1]} : vector<4x4x128xf32> to vector<1x1x128xf32>
    %53 = vector.shape_cast %52 : vector<1x1x128xf32> to vector<1x128xf32>
    %54 = vector.broadcast %53 : vector<1x128xf32> to vector<8x128xf32>
    %55 = arith.mulf %54, %5 : vector<8x128xf32>
    %56 = arith.addf %51, %55 : vector<8x128xf32>
    %57 = vector.extract_strided_slice %1 {offsets = [2, 2, 0], sizes = [1, 1, 128], strides = [1, 1, 1]} : vector<4x4x128xf32> to vector<1x1x128xf32>
    %58 = vector.shape_cast %57 : vector<1x1x128xf32> to vector<1x128xf32>
    %59 = vector.broadcast %58 : vector<1x128xf32> to vector<8x128xf32>
    %60 = arith.mulf %59, %7 : vector<8x128xf32>
    %61 = arith.addf %56, %60 : vector<8x128xf32>
    %62 = vector.extract_strided_slice %1 {offsets = [3, 2, 0], sizes = [1, 1, 128], strides = [1, 1, 1]} : vector<4x4x128xf32> to vector<1x1x128xf32>
    %63 = vector.shape_cast %62 : vector<1x1x128xf32> to vector<1x128xf32>
    %64 = vector.broadcast %63 : vector<1x128xf32> to vector<8x128xf32>
    %65 = arith.mulf %64, %9 : vector<8x128xf32>
    %66 = arith.addf %61, %65 : vector<8x128xf32>
    %67 = vector.extract_strided_slice %1 {offsets = [0, 3, 0], sizes = [1, 1, 128], strides = [1, 1, 1]} : vector<4x4x128xf32> to vector<1x1x128xf32>
    %68 = vector.shape_cast %67 : vector<1x1x128xf32> to vector<1x128xf32>
    %69 = vector.broadcast %68 : vector<1x128xf32> to vector<8x128xf32>
    %70 = arith.mulf %69, %3 : vector<8x128xf32>
    %71 = vector.extract_strided_slice %1 {offsets = [1, 3, 0], sizes = [1, 1, 128], strides = [1, 1, 1]} : vector<4x4x128xf32> to vector<1x1x128xf32>
    %72 = vector.shape_cast %71 : vector<1x1x128xf32> to vector<1x128xf32>
    %73 = vector.broadcast %72 : vector<1x128xf32> to vector<8x128xf32>
    %74 = arith.mulf %73, %5 : vector<8x128xf32>
    %75 = arith.addf %70, %74 : vector<8x128xf32>
    %76 = vector.extract_strided_slice %1 {offsets = [2, 3, 0], sizes = [1, 1, 128], strides = [1, 1, 1]} : vector<4x4x128xf32> to vector<1x1x128xf32>
    %77 = vector.shape_cast %76 : vector<1x1x128xf32> to vector<1x128xf32>
    %78 = vector.broadcast %77 : vector<1x128xf32> to vector<8x128xf32>
    %79 = arith.mulf %78, %7 : vector<8x128xf32>
    %80 = arith.addf %75, %79 : vector<8x128xf32>
    %81 = vector.extract_strided_slice %1 {offsets = [3, 3, 0], sizes = [1, 1, 128], strides = [1, 1, 1]} : vector<4x4x128xf32> to vector<1x1x128xf32>
    %82 = vector.shape_cast %81 : vector<1x1x128xf32> to vector<1x128xf32>
    %83 = vector.broadcast %82 : vector<1x128xf32> to vector<8x128xf32>
    %84 = arith.mulf %83, %9 : vector<8x128xf32>
    %85 = arith.addf %80, %84 : vector<8x128xf32>
    %86 = tpu.concatenate %28, %47, %66, %85 in 0 : vector<8x128xf32>, vector<8x128xf32>, vector<8x128xf32>, vector<8x128xf32> -> vector<32x128xf32>
    %c0_5 = arith.constant 0 : index
    %c0_6 = arith.constant 0 : index
    %87 = vector.load %arg1[%c0_5, %c0_6] : memref<8x32xf32, #tpu.memory_space<vmem>>, vector<8x32xf32>
    %cst = arith.constant dense<0.000000e+00> : vector<8x128xf32>
    %88 = tpu.matmul %87, %86, %cst {dimension_numbers = #tpu.dot_dimension_numbers<[1], [0], [0], [1], [0, 0, 1, 1], [], []>} : vector<8x32xf32>, vector<32x128xf32>, vector<8x128xf32> -> vector<8x128xf32>
    %c0_7 = arith.constant 0 : index
    %c0_8 = arith.constant 0 : index
    %89 = vector.load %arg4[%c0_7, %c0_8] : memref<1x128xf32, #tpu.memory_space<vmem>>, vector<1x128xf32>
    %90 = vector.broadcast %89 : vector<1x128xf32> to vector<8x128xf32>
    %91 = arith.addf %88, %90 : vector<8x128xf32>
    %c0_9 = arith.constant 0 : index
    %c0_10 = arith.constant 0 : index
    %92 = vector.load %arg5[%c0_9, %c0_10] : memref<8x128xf32, #tpu.memory_space<vmem>>, vector<8x128xf32>
    tpu.vector_store %arg5[%c0_9, %c0_10], %91 {strides = array<i32>} : memref<8x128xf32, #tpu.memory_space<vmem>>, vector<8x128xf32>,
    return
  }
  func.func @transform_0(%arg0: i32) -> (i32, i32) {
    %c0_i32 = arith.constant 0 : i32
    %c0_i32_0 = arith.constant 0 : i32
    return %arg0, %c0_i32 : i32, i32
  }
  func.func @transform_1(%arg0: i32) -> (i32, i32, i32) {
    %c0_i32 = arith.constant 0 : i32
    %c0_i32_0 = arith.constant 0 : i32
    %c0_i32_1 = arith.constant 0 : i32
    %c0_i32_2 = arith.constant 0 : i32
    return %c0_i32, %c0_i32_0, %c0_i32_1 : i32, i32, i32
  }
  func.func @transform_2(%arg0: i32) -> (i32, i32, i32) {
    %c0_i32 = arith.constant 0 : i32
    %c0_i32_0 = arith.constant 0 : i32
    %c0_i32_1 = arith.constant 0 : i32
    %c0_i32_2 = arith.constant 0 : i32
    return %c0_i32, %c0_i32_0, %c0_i32_1 : i32, i32, i32
  }
  func.func @transform_3(%arg0: i32) -> (i32, i32) {
    %c0_i32 = arith.constant 0 : i32
    %c0_i32_0 = arith.constant 0 : i32
    %c0_i32_1 = arith.constant 0 : i32
    return %c0_i32, %c0_i32_0 : i32, i32
  }
  func.func @transform_4(%arg0: i32) -> (i32, i32) {
    %c0_i32 = arith.constant 0 : i32
    %c0_i32_0 = arith.constant 0 : i32
    return %arg0, %c0_i32 : i32, i32
  }
}

</mosaic_0001>

<llo_original>
// kernel: tpu_custom_call.1
$region0: #{tpu_custom_call.1}
  #allocation0 [shape = 'u32[]', space=smem, size = 0x4, offset = 0x4, fixed_abs, tag = 'smem constant byte address 0x4 - core index']
  #allocation1 [shape = 'u32[144,128]{1,0:T(1,128)}', space=vmem, size = 0x12000, scoped, tag = 'internal scratch']
  %s0 = inlined_call_operand.hbm [shape: f32[8,32], index: 0, kind: input, shape index: {}]
  %s1 = inlined_call_operand.hbm [shape: f32[4,4,128], index: 1, kind: input, shape index: {}]
  %s2 = inlined_call_operand.hbm [shape: f32[4,8,128], index: 2, kind: input, shape index: {}]
  %s3 = inlined_call_operand.vmem [shape: f32[1,128], index: 3, kind: input, shape index: {}]
  %s4 = inlined_call_operand.hbm [shape: f32[8,128], index: 4, kind: output, shape index: {}]
  %s5 = sld [smem:[#allocation0]]
  $region38: #{tpu_custom_call.1} parent=0
    _
  %s7 = ssub.s32 1, %s5
  %s8 = scalar_select 0, %s7, %s5
  $region1: #{tpu_custom_call.1} parent=0
    #allocation2 [shape = 'u8[4096]{0}', space=vmem, size = 0x1000, scoped, tag = 'input window, operand 0, single buffered']
    #allocation3 [shape = 's32[1]{0}', space=sflag, size = 0x4, scoped, tag = 'scoped memory for tpu_custom_call.1']
    #allocation4 [shape = 's32[1]{0}', space=sflag, size = 0x4, scoped, tag = 'scoped memory for tpu_custom_call.1']
    #allocation5 [shape = 'u8[8192]{0}', space=vmem, size = 0x2000, scoped, tag = 'input window, operand 1, single buffered']
    #allocation6 [shape = 's32[1]{0}', space=sflag, size = 0x4, scoped, tag = 'scoped memory for tpu_custom_call.1']
    #allocation7 [shape = 'u8[16384]{0}', space=vmem, size = 0x4000, scoped, tag = 'input window, operand 2, single buffered']
    #allocation8 [shape = 'u8[4096]{0}', space=vmem, size = 0x1000, scoped, tag = 'output window, operand 0, single buffered']
    %9 = vsyncpa [#allocation3], 0
    %10 = vsyncpa [#allocation6], 0
    %11 = vsyncpa [#allocation4], 0
    // Predicated region
    $region2: #{tpu_custom_call.1} parent=1 // pred_check
      _
    $region3: #{tpu_custom_call.1} parent=1 // pred_check_branch
      %13 = sbr.rel (0) target = $region5
    $region4: #{tpu_custom_call.1} parent=1 // pred_region
      %s15 = ssub.s32 128, 128
      %16 = vsyncadd [#allocation3], %s15
      %s18 = sshll.u32 [#allocation2], 4
      %s19 = int_to_ptr.vmem [resolvable:$true] %s18
      %21 = dma.hbm_to_vmem [thread:$0]  %s0, 128, %s19, [#allocation3]
    $region5: #{tpu_custom_call.1} parent=1 // pred_fallthru
      _
    // Predicated region
    $region6: #{tpu_custom_call.1} parent=1 // pred_check
      _
    $region7: #{tpu_custom_call.1} parent=1 // pred_check_branch
      %23 = sbr.rel (0) target = $region9
    $region8: #{tpu_custom_call.1} parent=1 // pred_region
      %s25 = ssub.s32 256, 256
      %26 = vsyncadd [#allocation6], %s25
      %s27 = sshll.u32 [#allocation5], 4
      %s28 = int_to_ptr.vmem [resolvable:$true] %s27
      %33 = dma.hbm_to_vmem [thread:$0]  %s1, 256, %s28, [#allocation6], 64, 64, 4
    $region9: #{tpu_custom_call.1} parent=1 // pred_fallthru
      _
    // Predicated region
    $region10: #{tpu_custom_call.1} parent=1 // pred_check
      _
    $region11: #{tpu_custom_call.1} parent=1 // pred_check_branch
      %35 = sbr.rel (0) target = $region13
    $region12: #{tpu_custom_call.1} parent=1 // pred_region
      %s37 = ssub.s32 512, 512
      %38 = vsyncadd [#allocation6], %s37
      %s39 = sshll.u32 [#allocation7], 4
      %s40 = int_to_ptr.vmem [resolvable:$true] %s39
      %45 = dma.hbm_to_vmem [thread:$0]  %s2, 512, %s40, [#allocation6], 128, 128, 8
    $region13: #{tpu_custom_call.1} parent=1 // pred_fallthru
      _
    // Predicated region
    $region14: #{tpu_custom_call.1} parent=1 // pred_check
      _
    $region15: #{tpu_custom_call.1} parent=1 // pred_check_branch
      %47 = sbr.rel (0) target = $region17
    $region16: #{tpu_custom_call.1} parent=1 // pred_region
      _
    $region17: #{tpu_custom_call.1} parent=1 // pred_fallthru
      _
    // Predicated region
    $region18: #{tpu_custom_call.1} parent=1 // pred_check
      _
    $region19: #{tpu_custom_call.1} parent=1 // pred_check_branch
      %49 = sbr.rel (0) target = $region21
    $region20: #{tpu_custom_call.1} parent=1 // pred_region
      %50 = dma.done [#allocation3], 128
    $region21: #{tpu_custom_call.1} parent=1 // pred_fallthru
      _
    // Predicated region
    $region22: #{tpu_custom_call.1} parent=1 // pred_check
      _
    $region23: #{tpu_custom_call.1} parent=1 // pred_check_branch
      %52 = sbr.rel (0) target = $region25
    $region24: #{tpu_custom_call.1} parent=1 // pred_region
      %53 = dma.done [#allocation6], 256
    $region25: #{tpu_custom_call.1} parent=1 // pred_fallthru
      _
    // Predicated region
    $region26: #{tpu_custom_call.1} parent=1 // pred_check
      _
    $region27: #{tpu_custom_call.1} parent=1 // pred_check_branch
      %55 = sbr.rel (0) target = $region29
    $region28: #{tpu_custom_call.1} parent=1 // pred_region
      %56 = dma.done [#allocation6], 512
    $region29: #{tpu_custom_call.1} parent=1 // pred_fallthru
      _
    %v57 = vld [vmem:[#allocation7] sm:$0xff]
    %v58 = vld [vmem:[#allocation7 + $0x8] sm:$0xff]
    %v59 = vld [vmem:[#allocation7 + $0x10] sm:$0xff]
    %v60 = vld [vmem:[#allocation7 + $0x18] sm:$0xff]
    %v61 = vld [vmem:[#allocation5] sm:$0xf]
    %v62 = vld [vmem:[#allocation5 + $0x4] sm:$0xf]
    %v63 = vld [vmem:[#allocation5 + $0x8] sm:$0xf]
    %v64 = vld [vmem:[#allocation5 + $0xc] sm:$0xf]
    %v65 = vlaneseq
    %v66 = vshrl.u32 %v65, 7
    %v67 = vsub.s32 0, %v66
    %v68 = vrot.slane %v61, %v67
    %v69 = vmul.f32 %v68, %v57
    %v70 = vlaneseq
    %v71 = vshrl.u32 %v70, 7
    %v72 = vsub.s32 0, %v71
    %v73 = vrot.slane %v62, %v72
    %v74 = vmul.f32 %v73, %v58
    %v75 = vadd.f32 %v69, %v74
    %v76 = vlaneseq
    %v77 = vshrl.u32 %v76, 7
    %v78 = vsub.s32 0, %v77
    %v79 = vrot.slane %v63, %v78
    %v80 = vmul.f32 %v79, %v59
    %v81 = vadd.f32 %v75, %v80
    %v82 = vlaneseq
    %v83 = vshrl.u32 %v82, 7
    %v84 = vsub.s32 0, %v83
    %v85 = vrot.slane %v64, %v84
    %v86 = vmul.f32 %v85, %v60
    %v87 = vadd.f32 %v81, %v86
    %v88 = vlaneseq
    %v89 = vshrl.u32 %v88, 7
    %v90 = vsub.s32 1, %v89
    %v91 = vrot.slane %v61, %v90
    %v92 = vmul.f32 %v91, %v57
    %v93 = vlaneseq
    %v94 = vshrl.u32 %v93, 7
    %v95 = vsub.s32 1, %v94
    %v96 = vrot.slane %v62, %v95
    %v97 = vmul.f32 %v96, %v58
    %v98 = vadd.f32 %v92, %v97
    %v99 = vlaneseq
    %v100 = vshrl.u32 %v99, 7
    %v101 = vsub.s32 1, %v100
    %v102 = vrot.slane %v63, %v101
    %v103 = vmul.f32 %v102, %v59
    %v104 = vadd.f32 %v98, %v103
    %v105 = vlaneseq
    %v106 = vshrl.u32 %v105, 7
    %v107 = vsub.s32 1, %v106
    %v108 = vrot.slane %v64, %v107
    %v109 = vmul.f32 %v108, %v60
    %v110 = vadd.f32 %v104, %v109
    %v111 = vlaneseq
    %v112 = vshrl.u32 %v111, 7
    %v113 = vsub.s32 2, %v112
    %v114 = vrot.slane %v61, %v113
    %v115 = vmul.f32 %v114, %v57
    %v116 = vlaneseq
    %v117 = vshrl.u32 %v116, 7
    %v118 = vsub.s32 2, %v117
    %v119 = vrot.slane %v62, %v118
    %v120 = vmul.f32 %v119, %v58
    %v121 = vadd.f32 %v115, %v120
    %v122 = vlaneseq
    %v123 = vshrl.u32 %v122, 7
    %v124 = vsub.s32 2, %v123
    %v125 = vrot.slane %v63, %v124
    %v126 = vmul.f32 %v125, %v59
    %v127 = vadd.f32 %v121, %v126
    %v128 = vlaneseq
    %v129 = vshrl.u32 %v128, 7
    %v130 = vsub.s32 2, %v129
    %v131 = vrot.slane %v64, %v130
    %v132 = vmul.f32 %v131, %v60
    %v133 = vadd.f32 %v127, %v132
    %v134 = vlaneseq
    %v135 = vshrl.u32 %v134, 7
    %v136 = vsub.s32 3, %v135
    %v137 = vrot.slane %v61, %v136
    %v138 = vmul.f32 %v137, %v57
    %v139 = vlaneseq
    %v140 = vshrl.u32 %v139, 7
    %v141 = vsub.s32 3, %v140
    %v142 = vrot.slane %v62, %v141
    %v143 = vmul.f32 %v142, %v58
    %v144 = vadd.f32 %v138, %v143
    %v145 = vlaneseq
    %v146 = vshrl.u32 %v145, 7
    %v147 = vsub.s32 3, %v146
    %v148 = vrot.slane %v63, %v147
    %v149 = vmul.f32 %v148, %v59
    %v150 = vadd.f32 %v144, %v149
    %v151 = vlaneseq
    %v152 = vshrl.u32 %v151, 7
    %v153 = vsub.s32 3, %v152
    %v154 = vrot.slane %v64, %v153
    %v155 = vmul.f32 %v154, %v60
    %v156 = vadd.f32 %v150, %v155
    %v157 = vld [vmem:[#allocation2] sm:$0xff]
    %v158 = vld [vmem:[%s3] sm:$0x1]
    %v160 = vlaneseq
    %v161 = vshrl.u32 %v160, 7
    %v162 = vsub.s32 0, %v161
    %v163 = vrot.slane %v158, %v162
    %vm165 = vcmask 261120
    %v167 = vsel %vm165, %v157, 0
    %169 = vmatprep.subr.mxu0 0.0
    %170 = vmatpush1.msra.mxu0 0.0
    %171 = vmatprep.subr.mxu0 0.0
    %172 = vmatpush1.msra.mxu0 0.0
    %173 = vmatprep.subr.mxu0 0.0
    %174 = vmatpush1.msra.mxu0 0.0
    %175 = vmatprep.subr.mxu0 0.0
    %176 = vmatpush1.msra.mxu0 0.0
    %177 = vmatprep.subr.mxu0 0.0
    %178 = vmatpush1.msra.mxu0 0.0
    %179 = vmatprep.subr.mxu0 0.0
    %180 = vmatpush1.msra.mxu0 0.0
    %181 = vmatprep.subr.mxu0 0.0
    %182 = vmatpush1.msra.mxu0 0.0
    %183 = vmatprep.subr.mxu0 0.0
    %184 = vmatpush1.msra.mxu0 0.0
    %185 = vmatprep.subr.mxu0 0.0
    %186 = vmatpush1.msra.mxu0 0.0
    %187 = vmatprep.subr.mxu0 0.0
    %188 = vmatpush1.msra.mxu0 0.0
    %189 = vmatprep.subr.mxu0 0.0
    %190 = vmatpush1.msra.mxu0 0.0
    %191 = vmatprep.subr.mxu0 0.0
    %192 = vmatpush1.msra.mxu0 0.0
    %193 = vmatprep.subr.mxu0 0.0
    %194 = vmatpush1.msra.mxu0 %v156
    %195 = vmatprep.subr.mxu0 0.0
    %196 = vmatpush1.msra.mxu0 %v133
    %197 = vmatprep.subr.mxu0 0.0
    %198 = vmatpush1.msra.mxu0 %v110
    %199 = vmatprep.subr.mxu0 0.0
    %200 = vmatpush1.msra.mxu0 %v87
    %201 = vmatprep.subr.mxu0 0.0
    %202 = vmatpush2.msra.mxu0 0.0
    %203 = vmatprep.subr.mxu0 0.0
    %204 = vmatpush2.msra.mxu0 0.0
    %205 = vmatprep.subr.mxu0 0.0
    %206 = vmatpush2.msra.mxu0 0.0
    %207 = vmatprep.subr.mxu0 0.0
    %208 = vmatpush2.msra.mxu0 0.0
    %209 = vmatprep.subr.mxu0 0.0
    %210 = vmatpush2.msra.mxu0 0.0
    %211 = vmatprep.subr.mxu0 0.0
    %212 = vmatpush2.msra.mxu0 0.0
    %213 = vmatprep.subr.mxu0 0.0
    %214 = vmatpush2.msra.mxu0 0.0
    %215 = vmatprep.subr.mxu0 0.0
    %216 = vmatpush2.msra.mxu0 0.0
    %217 = vmatprep.subr.mxu0 0.0
    %218 = vmatpush2.msra.mxu0 0.0
    %219 = vmatprep.subr.mxu0 0.0
    %220 = vmatpush2.msra.mxu0 0.0
    %221 = vmatprep.subr.mxu0 0.0
    %222 = vmatpush2.msra.mxu0 0.0
    %223 = vmatprep.subr.mxu0 0.0
    %224 = vmatpush2.msra.mxu0 0.0
    %225 = vmatprep.subr.mxu0 0.0
    %226 = vmatpush2.msra.mxu0 0.0
    %227 = vmatprep.subr.mxu0 0.0
    %228 = vmatpush2.msra.mxu0 0.0
    %229 = vmatprep.subr.mxu0 0.0
    %230 = vmatpush2.msra.mxu0 0.0
    %231 = vmatprep.subr.mxu0 0.0
    %232 = vmatpush2.msra.mxu0 0.0
    %233 = vmatprep.mubr.f32.mxu0 0.0
    %234 = vmatmul.mubr.f32.gmra.mxu0 %v167
    %v235 = vpop.f32.mrf.mxu0
    %v236 = vadd.f32 %v163, %v235
    %v237 = vpop.f32.mrf.mxu0
    %238 = vdwg.mxu0
    %239 = vst [vmem:[#allocation8] sm:$0xff] %v236
    // Predicated region
    $region30: #{tpu_custom_call.1} parent=1 // pred_check
      _
    $region31: #{tpu_custom_call.1} parent=1 // pred_check_branch
      %241 = sbr.rel (0) target = $region33
    $region32: #{tpu_custom_call.1} parent=1 // pred_region
      %s243 = ssub.s32 128, 128
      %244 = vsyncadd [#allocation4], %s243
      %s246 = sshll.u32 [#allocation8], 4
      %s247 = int_to_ptr.vmem [resolvable:$true] %s246
      %249 = dma.vmem_to_hbm [thread:$0]  %s247, 128, %s4, [#allocation4]
    $region33: #{tpu_custom_call.1} parent=1 // pred_fallthru
      _
    // Predicated region
    $region34: #{tpu_custom_call.1} parent=1 // pred_check
      _
    $region35: #{tpu_custom_call.1} parent=1 // pred_check_branch
      %251 = sbr.rel (0) target = $region37
    $region36: #{tpu_custom_call.1} parent=1 // pred_region
      %252 = dma.done [#allocation4], 128
    $region37: #{tpu_custom_call.1} parent=1 // pred_fallthru
      _
    %253 = vsyncpa [#allocation3], 1
    %254 = vsyncpa [#allocation6], 1
    %255 = vsyncpa [#allocation4], 1

</llo_original>
